<compile_context>
chip_gen: v7x
topology: tpu7x:2x2x1
jax: 0.10.0
libtpu: 0.0.40
codegen_flags: <defaults>
</compile_context>

<pallas_src>
import math

import jax
import jax.numpy as jnp
from jax.experimental import pallas as pl
from jax.experimental.pallas import tpu as pltpu


# ---------------------------------------------------------------------------
# Layout helpers (pure XLA plumbing, done once at the network boundary).
# ---------------------------------------------------------------------------

def pack_batch(x):
    """(B, N, F) -> (N, B*F): batch packed into the lane dimension."""
    B, N, F = x.shape
    return jnp.transpose(x, (1, 0, 2)).reshape(N, B * F)


def unpack_batch(x_packed, batch):
    """(N, B*F) -> (B, N, F)."""
    N, BF = x_packed.shape
    F = BF // batch
    return jnp.transpose(x_packed.reshape(N, batch, F), (1, 0, 2))


def make_block_diag_weight(weight, batch):
    """W (Fin, Fout) -> kron(I_B, W) of shape (B*Fin, B*Fout)."""
    fin, fout = weight.shape
    eye = jnp.eye(batch, dtype=weight.dtype)
    return jnp.einsum("ij,ab->iajb", eye, weight).reshape(batch * fin, batch * fout)


def pack_bias(bias, batch):
    """bias (Fout,) -> (1, B*Fout), tiled per batch to match packed lanes."""
    return jnp.tile(bias, batch).reshape(1, batch * bias.shape[0])


# ---------------------------------------------------------------------------
# Single-layer kernel (packed layout).
# ---------------------------------------------------------------------------

def _make_gcn_kernel(att_first):
    def kernel(x_ref, wblk_ref, att_ref, bias_ref, o_ref):
        xp = x_ref[...]                            # (N, B*Fin)   batch in lanes
        wblk = wblk_ref[...]                       # (B*Fin, B*Fout) block-diag
        att = att_ref[...]                         # (N, N)
        bias = bias_ref[...].astype(jnp.float32)   # (1, B*Fout)

        if att_first:
            # (att @ x) @ W_blk : contract the node dim first (Fin <= Fout).
            y = jnp.dot(att, xp, preferred_element_type=jnp.float32)       # (N, B*Fin)
            out = jnp.dot(y.astype(wblk.dtype), wblk,
                          preferred_element_type=jnp.float32)              # (N, B*Fout)
        else:
            # att @ (x @ W_blk) : cheaper when Fout < Fin.
            support = jnp.dot(xp, wblk, preferred_element_type=jnp.float32)
            out = jnp.dot(att, support.astype(att.dtype),
                          preferred_element_type=jnp.float32)

        o_ref[...] = (out + bias).astype(o_ref.dtype)

    return kernel


def graph_convolution_packed(x_packed, w_blk, att, bias_packed, *,
                             in_features, out_features, out_dtype=None):
    """Forward in packed layout: (N, B*Fin) -> (N, B*Fout).

    Use this directly to chain layers without per-layer pack/unpack copies.
    """
    N, BFin = x_packed.shape
    B = BFin // in_features
    BFout = B * out_features
    if out_dtype is None:
        out_dtype = x_packed.dtype

    att_first = in_features <= out_features
    # Actual MXU FLOPs of the chosen association (block-diag zeros included).
    if att_first:
        flops = 2 * N * N * BFin + 2 * N * BFin * BFout
    else:
        flops = 2 * N * BFin * BFout + 2 * N * N * BFout
    bytes_accessed = int(
        x_packed.size * x_packed.dtype.itemsize
        + w_blk.size * w_blk.dtype.itemsize
        + att.size * att.dtype.itemsize
        + bias_packed.size * bias_packed.dtype.itemsize
        + N * BFout * jnp.dtype(out_dtype).itemsize)

    return pl.pallas_call(
        _make_gcn_kernel(att_first),
        out_shape=jax.ShapeDtypeStruct((N, BFout), out_dtype),
        grid=(1,),  # all operands resident; single step, no per-batch loop
        in_specs=[
            pl.BlockSpec((N, BFin), lambda i: (0, 0)),     # x (batch in lanes)
            pl.BlockSpec((BFin, BFout), lambda i: (0, 0)),  # W_blk
            pl.BlockSpec((N, N), lambda i: (0, 0)),         # att
            pl.BlockSpec((1, BFout), lambda i: (0, 0)),     # bias (lane-packed)
        ],
        out_specs=pl.BlockSpec((N, BFout), lambda i: (0, 0)),
        compiler_params=pltpu.CompilerParams(
            dimension_semantics=("arbitrary",)),
        cost_estimate=pl.CostEstimate(
            flops=flops, transcendentals=0, bytes_accessed=bytes_accessed),
    )(x_packed, w_blk, att, bias_packed)


def graph_convolution(x, weight, att, bias=None, *, matmul_dtype=None):
    """PyTorch-shaped forward of GraphConvolution.

    x: (B, N, Fin); weight: (Fin, Fout); att: (N, N); bias: (Fout,) or None.
    matmul_dtype: optionally cast MXU operands (e.g. jnp.bfloat16) — helps on
    all of v5e/v6e/v7x; accumulation stays f32 via preferred_element_type.
    Returns (B, N, Fout) in x.dtype.
    """
    B, N, Fin = x.shape
    Fout = weight.shape[1]
    out_dtype = x.dtype

    if bias is None:
        bias = jnp.zeros((Fout,), dtype=out_dtype)

    x_packed = pack_batch(x)                       # (N, B*Fin)
    w_blk = make_block_diag_weight(weight, B)      # (B*Fin, B*Fout)
    bias_packed = pack_bias(bias, B)               # (1, B*Fout)

    if matmul_dtype is not None:
        x_packed = x_packed.astype(matmul_dtype)
        w_blk = w_blk.astype(matmul_dtype)
        att = att.astype(matmul_dtype)

    out_packed = graph_convolution_packed(
        x_packed, w_blk, att, bias_packed,
        in_features=Fin, out_features=Fout, out_dtype=out_dtype)
    return unpack_batch(out_packed, B)


# ---------------------------------------------------------------------------
# Fused multi-layer stack (biggest wall-clock lever at these tiny shapes).
# ---------------------------------------------------------------------------

def _stack_kernel(x_ref, att_ref, wblk_ref, bias_ref, o_ref, h_ref):
    layer = pl.program_id(0)

    @pl.when(layer == 0)
    def _():
        h_ref[...] = x_ref[...].astype(jnp.float32)

    att = att_ref[0]                         # (N, N)
    wblk = wblk_ref[0]                       # (B*F, B*F)
    bias = bias_ref[0].astype(jnp.float32)   # (1, B*F)

    support = jnp.dot(h_ref[...], wblk, preferred_element_type=jnp.float32)
    h_ref[...] = jnp.dot(att, support, preferred_element_type=jnp.float32) + bias

    @pl.when(layer == pl.num_programs(0) - 1)
    def _():
        o_ref[...] = h_ref[...].astype(o_ref.dtype)


def graph_convolution_stack(x, weights, atts, biases):
    """Fuse L successive GraphConvolution layers (all F -> F, shared node_n)
    into one pallas_call: activation stays resident in VMEM in packed
    (N, B*F) layout; per-layer att / W_blk / bias are streamed in.

    x: (B, N, F); weights: (L, F, F); atts: (L, N, N); biases: (L, F).
    """
    B, N, F = x.shape
    L = weights.shape[0]
    assert weights.shape == (L, F, F)
    assert atts.shape == (L, N, N)
    assert biases.shape == (L, F)
    BF = B * F

    x_packed = pack_batch(x)                                        # (N, B*F)
    eye = jnp.eye(B, dtype=weights.dtype)
    w_blk = jnp.einsum("ij,lab->liajb", eye, weights).reshape(L, BF, BF)
    bias_packed = jnp.tile(biases, (1, B)).reshape(L, 1, BF)        # (L, 1, B*F)

    flops = L * (2 * N * BF * BF + 2 * N * N * BF)
    bytes_accessed = int(
        x_packed.size * x_packed.dtype.itemsize
        + w_blk.size * w_blk.dtype.itemsize
        + atts.size * atts.dtype.itemsize
        + bias_packed.size * bias_packed.dtype.itemsize
        + N * BF * jnp.dtype(x.dtype).itemsize)

    out_packed = pl.pallas_call(
        _stack_kernel,
        out_shape=jax.ShapeDtypeStruct((N, BF), x.dtype),
        grid_spec=pltpu.PrefetchScalarGridSpec(
            num_scalar_prefetch=0,
            grid=(L,),
            in_specs=[
                pl.BlockSpec((N, BF), lambda l: (0, 0)),         # x (used at l=0)
                pl.BlockSpec((1, N, N), lambda l: (l, 0, 0)),    # att[l]
                pl.BlockSpec((1, BF, BF), lambda l: (l, 0, 0)),  # W_blk[l]
                pl.BlockSpec((1, 1, BF), lambda l: (l, 0, 0)),   # bias[l]
            ],
            out_specs=pl.BlockSpec((N, BF), lambda l: (0, 0)),
            scratch_shapes=[pltpu.VMEM((N, BF), jnp.float32)],
        ),
        compiler_params=pltpu.CompilerParams(
            dimension_semantics=("arbitrary",)),
        cost_estimate=pl.CostEstimate(
            flops=flops, transcendentals=0, bytes_accessed=bytes_accessed),
    )(x_packed, atts, w_blk, bias_packed)
    return unpack_batch(out_packed, B)


# ---------------------------------------------------------------------------
# Parameter init matching GraphConvolution.reset_parameters.
# ---------------------------------------------------------------------------

def init_params(key, in_features, out_features, node_n):
    stdv = 1.0 / math.sqrt(out_features)
    kw, ka, kb = jax.random.split(key, 3)
    weight = jax.random.uniform(kw, (in_features, out_features),
                                dtype=jnp.float32, minval=-stdv, maxval=stdv)
    att = jax.random.uniform(ka, (node_n, node_n),
                             dtype=jnp.float32, minval=-stdv, maxval=stdv)
    bias = jax.random.uniform(kb, (out_features,),
                              dtype=jnp.float32, minval=-stdv, maxval=stdv)
    return weight, att, bias


if __name__ == "__main__":
    B, node_n, in_features, out_features = 2, 48, 32, 64

    key = jax.random.PRNGKey(0)
    kx, kp, ks, kh = jax.random.split(key, 4)
    x = jax.random.normal(kx, (B, node_n, in_features), dtype=jnp.float32)
    weight, att, bias = init_params(kp, in_features, out_features, node_n)

    # Single GraphConvolution layer (matches the PyTorch module).
    out = jax.block_until_ready(graph_convolution(x, weight, att, bias))
    ref = jnp.matmul(att, jnp.matmul(x, weight)) + bias
    assert out.shape == (B, node_n, out_features)
    assert jnp.allclose(out, ref, atol=1e-4, rtol=1e-4), \
        float(jnp.max(jnp.abs(out - ref)))

    # Fused stack of L GraphConvolution layers (hidden -> hidden) in one call.
    L, hidden = 3, 64
    stdv = 1.0 / math.sqrt(hidden)
    kw, ka, kb = jax.random.split(ks, 3)
    weights = jax.random.uniform(kw, (L, hidden, hidden), dtype=jnp.float32,
                                 minval=-stdv, maxval=stdv)
    atts = jax.random.uniform(ka, (L, node_n, node_n), dtype=jnp.float32,
                              minval=-stdv, maxval=stdv)
    biases = jax.random.uniform(kb, (L, hidden), dtype=jnp.float32,
                                minval=-stdv, maxval=stdv)
    xs = jax.random.normal(kh, (B, node_n, hidden), dtype=jnp.float32)

    out_stack = jax.block_until_ready(
        graph_convolution_stack(xs, weights, atts, biases))
    ref_stack = xs
    for l in range(L):
        ref_stack = jnp.matmul(atts[l], jnp.matmul(ref_stack, weights[l])) + biases[l]
    assert out_stack.shape == (B, node_n, hidden)
    assert jnp.allclose(out_stack, ref_stack, atol=1e-3, rtol=1e-3), \
        float(jnp.max(jnp.abs(out_stack - ref_stack)))

    print("KERNEL_OK")
</pallas_src>

<mosaic_0001>
module attributes {stable_mosaic.version = 11 : i64} {
  func.func @kernel(%arg0: i32, %arg1: memref<48x64xf32, #tpu.memory_space<vmem>>, %arg2: memref<64x128xf32, #tpu.memory_space<vmem>>, %arg3: memref<48x48xf32, #tpu.memory_space<vmem>>, %arg4: memref<1x128xf32, #tpu.memory_space<vmem>>, %arg5: memref<48x128xf32, #tpu.memory_space<vmem>>) attributes {dimension_semantics = [#tpu.dimension_semantics<arbitrary>], iteration_bounds = array<i64: 1>, scalar_prefetch = 0 : i64, scratch_operands = 0 : i64, tpu.core_type = #tpu.core_type<tc>, window_params = [{pipeline_mode = #tpu.pipeline_mode<synchronous>, transform_indices = @transform_0, window_bounds = array<i64: 48, 64>}, {pipeline_mode = #tpu.pipeline_mode<synchronous>, transform_indices = @transform_1, window_bounds = array<i64: 64, 128>}, {pipeline_mode = #tpu.pipeline_mode<synchronous>, transform_indices = @transform_2, window_bounds = array<i64: 48, 48>}, {pipeline_mode = #tpu.pipeline_mode<synchronous>, transform_indices = @transform_3, window_bounds = array<i64: 1, 128>}, {pipeline_mode = #tpu.pipeline_mode<synchronous>, transform_indices = @transform_4, window_bounds = array<i64: 48, 128>}]} {
    %c0 = arith.constant 0 : index
    %c0_0 = arith.constant 0 : index
    %0 = vector.load %arg1[%c0, %c0_0] : memref<48x64xf32, #tpu.memory_space<vmem>>, vector<48x64xf32>
    %c0_1 = arith.constant 0 : index
    %c0_2 = arith.constant 0 : index
    %1 = vector.load %arg2[%c0_1, %c0_2] : memref<64x128xf32, #tpu.memory_space<vmem>>, vector<64x128xf32>
    %c0_3 = arith.constant 0 : index
    %c0_4 = arith.constant 0 : index
    %2 = vector.load %arg3[%c0_3, %c0_4] : memref<48x48xf32, #tpu.memory_space<vmem>>, vector<48x48xf32>
    %c0_5 = arith.constant 0 : index
    %c0_6 = arith.constant 0 : index
    %3 = vector.load %arg4[%c0_5, %c0_6] : memref<1x128xf32, #tpu.memory_space<vmem>>, vector<1x128xf32>
    %cst = arith.constant dense<0.000000e+00> : vector<48x64xf32>
    %4 = tpu.matmul %2, %0, %cst {dimension_numbers = #tpu.dot_dimension_numbers<[1], [0], [0], [1], [0, 0, 1, 1], [], []>} : vector<48x48xf32>, vector<48x64xf32>, vector<48x64xf32> -> vector<48x64xf32>
    %cst_7 = arith.constant dense<0.000000e+00> : vector<48x128xf32>
    %5 = tpu.matmul %4, %1, %cst_7 {dimension_numbers = #tpu.dot_dimension_numbers<[1], [0], [0], [1], [0, 0, 1, 1], [], []>} : vector<48x64xf32>, vector<64x128xf32>, vector<48x128xf32> -> vector<48x128xf32>
    %6 = vector.broadcast %3 : vector<1x128xf32> to vector<48x128xf32>
    %7 = arith.addf %5, %6 : vector<48x128xf32>
    %c0_8 = arith.constant 0 : index
    %c0_9 = arith.constant 0 : index
    %8 = vector.load %arg5[%c0_8, %c0_9] : memref<48x128xf32, #tpu.memory_space<vmem>>, vector<48x128xf32>
    tpu.vector_store %arg5[%c0_8, %c0_9], %7 {strides = array<i32>} : memref<48x128xf32, #tpu.memory_space<vmem>>, vector<48x128xf32>,
    return
  }
  func.func @transform_0(%arg0: i32) -> (i32, i32) {
    %c0_i32 = arith.constant 0 : i32
    %c0_i32_0 = arith.constant 0 : i32
    %c0_i32_1 = arith.constant 0 : i32
    return %c0_i32, %c0_i32_0 : i32, i32
  }
  func.func @transform_1(%arg0: i32) -> (i32, i32) {
    %c0_i32 = arith.constant 0 : i32
    %c0_i32_0 = arith.constant 0 : i32
    %c0_i32_1 = arith.constant 0 : i32
    return %c0_i32, %c0_i32_0 : i32, i32
  }
  func.func @transform_2(%arg0: i32) -> (i32, i32) {
    %c0_i32 = arith.constant 0 : i32
    %c0_i32_0 = arith.constant 0 : i32
    %c0_i32_1 = arith.constant 0 : i32
    return %c0_i32, %c0_i32_0 : i32, i32
  }
  func.func @transform_3(%arg0: i32) -> (i32, i32) {
    %c0_i32 = arith.constant 0 : i32
    %c0_i32_0 = arith.constant 0 : i32
    %c0_i32_1 = arith.constant 0 : i32
    return %c0_i32, %c0_i32_0 : i32, i32
  }
  func.func @transform_4(%arg0: i32) -> (i32, i32) {
    %c0_i32 = arith.constant 0 : i32
    %c0_i32_0 = arith.constant 0 : i32
    %c0_i32_1 = arith.constant 0 : i32
    return %c0_i32, %c0_i32_0 : i32, i32
  }
}

</mosaic_0001>

<llo_original>
// kernel: tpu_custom_call.1
$region0: #{tpu_custom_call.1}
  #allocation0 [shape = 'u32[]', space=smem, size = 0x4, offset = 0x4, fixed_abs, tag = 'smem constant byte address 0x4 - core index']
  #allocation1 [shape = 'u32[144,128]{1,0:T(1,128)}', space=vmem, size = 0x12000, scoped, tag = 'internal scratch']
  %s0 = inlined_call_operand.hbm [shape: f32[48,64], index: 0, kind: input, shape index: {}]
  %s1 = inlined_call_operand.hbm [shape: f32[64,128], index: 1, kind: input, shape index: {}]
  %s2 = inlined_call_operand.hbm [shape: f32[48,48], index: 2, kind: input, shape index: {}]
  %s3 = inlined_call_operand.vmem [shape: f32[1,128], index: 3, kind: input, shape index: {}]
  %s4 = inlined_call_operand.hbm [shape: f32[48,128], index: 4, kind: output, shape index: {}]
  %s5 = sld [smem:[#allocation0]]
  $region38: #{tpu_custom_call.1} parent=0
    _
  %s7 = ssub.s32 1, %s5
  %s8 = scalar_select 0, %s7, %s5
  $region1: #{tpu_custom_call.1} parent=0
    #allocation2 [shape = 'u8[24576]{0}', space=vmem, size = 0x6000, scoped, tag = 'input window, operand 0, single buffered']
    #allocation3 [shape = 's32[1]{0}', space=sflag, size = 0x4, scoped, tag = 'scoped memory for tpu_custom_call.1']
    #allocation4 [shape = 's32[1]{0}', space=sflag, size = 0x4, scoped, tag = 'scoped memory for tpu_custom_call.1']
    #allocation5 [shape = 'u8[32768]{0}', space=vmem, size = 0x8000, scoped, tag = 'input window, operand 1, single buffered']
    #allocation6 [shape = 's32[1]{0}', space=sflag, size = 0x4, scoped, tag = 'scoped memory for tpu_custom_call.1']
    #allocation7 [shape = 'u8[24576]{0}', space=vmem, size = 0x6000, scoped, tag = 'input window, operand 2, single buffered']
    #allocation8 [shape = 'u8[24576]{0}', space=vmem, size = 0x6000, scoped, tag = 'output window, operand 0, single buffered']
    %9 = vsyncpa [#allocation3], 0
    %10 = vsyncpa [#allocation6], 0
    %11 = vsyncpa [#allocation4], 0
    // Predicated region
    $region2: #{tpu_custom_call.1} parent=1 // pred_check
      _
    $region3: #{tpu_custom_call.1} parent=1 // pred_check_branch
      %13 = sbr.rel (0) target = $region5
    $region4: #{tpu_custom_call.1} parent=1 // pred_region
      %s15 = ssub.s32 768, 768
      %16 = vsyncadd [#allocation3], %s15
      %s17 = sshll.u32 [#allocation2], 4
      %s18 = int_to_ptr.vmem [resolvable:$true] %s17
      %23 = dma.hbm_to_vmem [thread:$0]  %s0, 768, %s18, [#allocation3], 128, 128, 8
    $region5: #{tpu_custom_call.1} parent=1 // pred_fallthru
      _
    // Predicated region
    $region6: #{tpu_custom_call.1} parent=1 // pred_check
      _
    $region7: #{tpu_custom_call.1} parent=1 // pred_check_branch
      %25 = sbr.rel (0) target = $region9
    $region8: #{tpu_custom_call.1} parent=1 // pred_region
      %s27 = ssub.s32 1024, 1024
      %28 = vsyncadd [#allocation6], %s27
      %s29 = sshll.u32 [#allocation5], 4
      %s30 = int_to_ptr.vmem [resolvable:$true] %s29
      %35 = dma.hbm_to_vmem [thread:$0]  %s1, 1024, %s30, [#allocation6], 128, 128, 8
    $region9: #{tpu_custom_call.1} parent=1 // pred_fallthru
      _
    // Predicated region
    $region10: #{tpu_custom_call.1} parent=1 // pred_check
      _
    $region11: #{tpu_custom_call.1} parent=1 // pred_check_branch
      %37 = sbr.rel (0) target = $region13
    $region12: #{tpu_custom_call.1} parent=1 // pred_region
      %s39 = ssub.s32 768, 768
      %40 = vsyncadd [#allocation6], %s39
      %s41 = sshll.u32 [#allocation7], 4
      %s42 = int_to_ptr.vmem [resolvable:$true] %s41
      %47 = dma.hbm_to_vmem [thread:$0]  %s2, 768, %s42, [#allocation6], 128, 128, 8
    $region13: #{tpu_custom_call.1} parent=1 // pred_fallthru
      _
    // Predicated region
    $region14: #{tpu_custom_call.1} parent=1 // pred_check
      _
    $region15: #{tpu_custom_call.1} parent=1 // pred_check_branch
      %49 = sbr.rel (0) target = $region17
    $region16: #{tpu_custom_call.1} parent=1 // pred_region
      _
    $region17: #{tpu_custom_call.1} parent=1 // pred_fallthru
      _
    // Predicated region
    $region18: #{tpu_custom_call.1} parent=1 // pred_check
      _
    $region19: #{tpu_custom_call.1} parent=1 // pred_check_branch
      %51 = sbr.rel (0) target = $region21
    $region20: #{tpu_custom_call.1} parent=1 // pred_region
      %52 = dma.done [#allocation3], 768
    $region21: #{tpu_custom_call.1} parent=1 // pred_fallthru
      _
    // Predicated region
    $region22: #{tpu_custom_call.1} parent=1 // pred_check
      _
    $region23: #{tpu_custom_call.1} parent=1 // pred_check_branch
      %54 = sbr.rel (0) target = $region25
    $region24: #{tpu_custom_call.1} parent=1 // pred_region
      %55 = dma.done [#allocation6], 1024
    $region25: #{tpu_custom_call.1} parent=1 // pred_fallthru
      _
    // Predicated region
    $region26: #{tpu_custom_call.1} parent=1 // pred_check
      _
    $region27: #{tpu_custom_call.1} parent=1 // pred_check_branch
      %57 = sbr.rel (0) target = $region29
    $region28: #{tpu_custom_call.1} parent=1 // pred_region
      %58 = dma.done [#allocation6], 768
    $region29: #{tpu_custom_call.1} parent=1 // pred_fallthru
      _
    %v59 = vld [vmem:[#allocation2] sm:$0xff]
    %v60 = vld [vmem:[#allocation2 + $0x8] sm:$0xff]
    %v61 = vld [vmem:[#allocation2 + $0x10] sm:$0xff]
    %v62 = vld [vmem:[#allocation2 + $0x18] sm:$0xff]
    %v63 = vld [vmem:[#allocation2 + $0x20] sm:$0xff]
    %v64 = vld [vmem:[#allocation2 + $0x28] sm:$0xff]
    %v65 = vld [vmem:[#allocation5] sm:$0xff]
    %v66 = vld [vmem:[#allocation5 + $0x8] sm:$0xff]
    %v67 = vld [vmem:[#allocation5 + $0x10] sm:$0xff]
    %v68 = vld [vmem:[#allocation5 + $0x18] sm:$0xff]
    %v69 = vld [vmem:[#allocation5 + $0x20] sm:$0xff]
    %v70 = vld [vmem:[#allocation5 + $0x28] sm:$0xff]
    %v71 = vld [vmem:[#allocation5 + $0x30] sm:$0xff]
    %v72 = vld [vmem:[#allocation5 + $0x38] sm:$0xff]
    %v73 = vld [vmem:[#allocation7] sm:$0xff]
    %v74 = vld [vmem:[#allocation7 + $0x8] sm:$0xff]
    %v75 = vld [vmem:[#allocation7 + $0x10] sm:$0xff]
    %v76 = vld [vmem:[#allocation7 + $0x18] sm:$0xff]
    %v77 = vld [vmem:[#allocation7 + $0x20] sm:$0xff]
    %v78 = vld [vmem:[#allocation7 + $0x28] sm:$0xff]
    %v79 = vld [vmem:[%s3] sm:$0x1]
    %vm80 = vcmask 392192
    %v82 = vsel %vm80, %v73, 0
    %v85 = vsel %vm80, %v74, 0
    %v88 = vsel %vm80, %v75, 0
    %v91 = vsel %vm80, %v76, 0
    %v94 = vsel %vm80, %v77, 0
    %v97 = vsel %vm80, %v78, 0
    %99 = vmatprep.subr.mxu0 0.0
    %100 = vmatpush1.msra.mxu0 %v59
    %101 = vmatprep.subr.mxu0 0.0
    %102 = vmatpush1.msra.mxu0 %v60
    %103 = vmatprep.subr.mxu0 0.0
    %104 = vmatpush1.msra.mxu0 %v61
    %105 = vmatprep.subr.mxu0 0.0
    %106 = vmatpush1.msra.mxu0 %v62
    %107 = vmatprep.subr.mxu0 0.0
    %108 = vmatpush1.msra.mxu0 %v63
    %109 = vmatprep.subr.mxu0 0.0
    %110 = vmatpush1.msra.mxu0 %v64
    %111 = vmatprep.subr.mxu0 0.0
    %112 = vmatpush1.msra.mxu0 0.0
    %113 = vmatprep.subr.mxu0 0.0
    %114 = vmatpush1.msra.mxu0 0.0
    %115 = vmatprep.subr.mxu0 0.0
    %116 = vmatpush1.msra.mxu0 0.0
    %117 = vmatprep.subr.mxu0 0.0
    %118 = vmatpush1.msra.mxu0 0.0
    %119 = vmatprep.subr.mxu0 0.0
    %120 = vmatpush1.msra.mxu0 0.0
    %121 = vmatprep.subr.mxu0 0.0
    %122 = vmatpush1.msra.mxu0 0.0
    %123 = vmatprep.subr.mxu0 0.0
    %124 = vmatpush1.msra.mxu0 0.0
    %125 = vmatprep.subr.mxu0 0.0
    %126 = vmatpush1.msra.mxu0 0.0
    %127 = vmatprep.subr.mxu0 0.0
    %128 = vmatpush1.msra.mxu0 0.0
    %129 = vmatprep.subr.mxu0 0.0
    %130 = vmatpush1.msra.mxu0 0.0
    %131 = vmatprep.subr.mxu0 0.0
    %132 = vmatpush1.msra.mxu0 0.0
    %133 = vmatprep.subr.mxu0 0.0
    %134 = vmatpush1.msra.mxu0 0.0
    %135 = vmatprep.subr.mxu0 0.0
    %136 = vmatpush1.msra.mxu0 0.0
    %137 = vmatprep.subr.mxu0 0.0
    %138 = vmatpush1.msra.mxu0 0.0
    %139 = vmatprep.subr.mxu0 0.0
    %140 = vmatpush1.msra.mxu0 0.0
    %141 = vmatprep.subr.mxu0 0.0
    %142 = vmatpush1.msra.mxu0 0.0
    %143 = vmatprep.subr.mxu0 0.0
    %144 = vmatpush1.msra.mxu0 0.0
    %145 = vmatprep.subr.mxu0 0.0
    %146 = vmatpush1.msra.mxu0 0.0
    %147 = vmatprep.subr.mxu0 0.0
    %148 = vmatpush1.msra.mxu0 0.0
    %149 = vmatprep.subr.mxu0 0.0
    %150 = vmatpush1.msra.mxu0 0.0
    %151 = vmatprep.subr.mxu0 0.0
    %152 = vmatpush1.msra.mxu0 0.0
    %153 = vmatprep.subr.mxu0 0.0
    %154 = vmatpush1.msra.mxu0 0.0
    %155 = vmatprep.subr.mxu0 0.0
    %156 = vmatpush1.msra.mxu0 0.0
    %157 = vmatprep.subr.mxu0 0.0
    %158 = vmatpush1.msra.mxu0 0.0
    %159 = vmatprep.subr.mxu0 0.0
    %160 = vmatpush1.msra.mxu0 0.0
    %161 = vmatprep.subr.mxu0 0.0
    %162 = vmatpush1.msra.mxu0 0.0
    %163 = vmatprep.mubr.f32.mxu0 0.0
    %164 = vmatmul.mubr.f32.gmra.mrb[0].mxu0 %v82
    %v165 = vpop.f32.mrb[0].mxu0
    %v166 = vadd.f32 0.0, %v165
    %v167 = vpop.f32.mrb[0].mxu0
    %168 = vmatprep.mubr.f32.mxu0 0.0
    %169 = vmatmul.mubr.f32.gmra.mrb[0].mxu0 %v85
    %v170 = vpop.f32.mrb[0].mxu0
    %v171 = vadd.f32 0.0, %v170
    %v172 = vpop.f32.mrb[0].mxu0
    %173 = vmatprep.mubr.f32.mxu0 0.0
    %174 = vmatmul.mubr.f32.gmra.mrb[0].mxu0 %v88
    %v175 = vpop.f32.mrb[0].mxu0
    %v176 = vadd.f32 0.0, %v175
    %v177 = vpop.f32.mrb[0].mxu0
    %178 = vmatprep.mubr.f32.mxu0 0.0
    %179 = vmatmul.mubr.f32.gmra.mrb[0].mxu0 %v91
    %v180 = vpop.f32.mrb[0].mxu0
    %v181 = vadd.f32 0.0, %v180
    %v182 = vpop.f32.mrb[0].mxu0
    %183 = vmatprep.mubr.f32.mxu0 0.0
    %184 = vmatmul.mubr.f32.gmra.mrb[0].mxu0 %v94
    %v185 = vpop.f32.mrb[0].mxu0
    %v186 = vadd.f32 0.0, %v185
    %v187 = vpop.f32.mrb[0].mxu0
    %188 = vmatprep.mubr.f32.mxu0 0.0
    %189 = vmatmul.mubr.f32.gmra.mrb[0].mxu0 %v97
    %v190 = vpop.f32.mrb[0].mxu0
    %v191 = vadd.f32 0.0, %v190
    %v192 = vpop.f32.mrb[0].mxu0
    %193 = vdwg.mxu0
    %v195 = vlaneseq
    %v196 = vshrl.u32 %v195, 7
    %v197 = vsub.s32 0, %v196
    %v198 = vrot.slane %v79, %v197
    %vm200 = vcmask 523264
    %v202 = vsel %vm200, %v166, 0
    %v205 = vsel %vm200, %v171, 0
    %v208 = vsel %vm200, %v176, 0
    %v211 = vsel %vm200, %v181, 0
    %v214 = vsel %vm200, %v186, 0
    %v217 = vsel %vm200, %v191, 0
    %219 = vmatprep.subr.mxu0 0.0
    %220 = vmatpush1.msra.mxu0 %v65
    %221 = vmatprep.subr.mxu0 0.0
    %222 = vmatpush1.msra.mxu0 %v66
    %223 = vmatprep.subr.mxu0 0.0
    %224 = vmatpush1.msra.mxu0 %v67
    %225 = vmatprep.subr.mxu0 0.0
    %226 = vmatpush1.msra.mxu0 %v68
    %227 = vmatprep.subr.mxu0 0.0
    %228 = vmatpush1.msra.mxu0 %v69
    %229 = vmatprep.subr.mxu0 0.0
    %230 = vmatpush1.msra.mxu0 %v70
    %231 = vmatprep.subr.mxu0 0.0
    %232 = vmatpush1.msra.mxu0 %v71
    %233 = vmatprep.subr.mxu0 0.0
    %234 = vmatpush1.msra.mxu0 %v72
    %235 = vmatprep.subr.mxu0 0.0
    %236 = vmatpush1.msra.mxu0 0.0
    %237 = vmatprep.subr.mxu0 0.0
    %238 = vmatpush1.msra.mxu0 0.0
    %239 = vmatprep.subr.mxu0 0.0
    %240 = vmatpush1.msra.mxu0 0.0
    %241 = vmatprep.subr.mxu0 0.0
    %242 = vmatpush1.msra.mxu0 0.0
    %243 = vmatprep.subr.mxu0 0.0
    %244 = vmatpush1.msra.mxu0 0.0
    %245 = vmatprep.subr.mxu0 0.0
    %246 = vmatpush1.msra.mxu0 0.0
    %247 = vmatprep.subr.mxu0 0.0
    %248 = vmatpush1.msra.mxu0 0.0
    %249 = vmatprep.subr.mxu0 0.0
    %250 = vmatpush1.msra.mxu0 0.0
    %251 = vmatprep.subr.mxu0 0.0
    %252 = vmatpush1.msra.mxu0 0.0
    %253 = vmatprep.subr.mxu0 0.0
    %254 = vmatpush1.msra.mxu0 0.0
    %255 = vmatprep.subr.mxu0 0.0
    %256 = vmatpush1.msra.mxu0 0.0
    %257 = vmatprep.subr.mxu0 0.0
    %258 = vmatpush1.msra.mxu0 0.0
    %259 = vmatprep.subr.mxu0 0.0
    %260 = vmatpush1.msra.mxu0 0.0
    %261 = vmatprep.subr.mxu0 0.0
    %262 = vmatpush1.msra.mxu0 0.0
    %263 = vmatprep.subr.mxu0 0.0
    %264 = vmatpush1.msra.mxu0 0.0
    %265 = vmatprep.subr.mxu0 0.0
    %266 = vmatpush1.msra.mxu0 0.0
    %267 = vmatprep.subr.mxu0 0.0
    %268 = vmatpush1.msra.mxu0 0.0
    %269 = vmatprep.subr.mxu0 0.0
    %270 = vmatpush1.msra.mxu0 0.0
    %271 = vmatprep.subr.mxu0 0.0
    %272 = vmatpush1.msra.mxu0 0.0
    %273 = vmatprep.subr.mxu0 0.0
    %274 = vmatpush1.msra.mxu0 0.0
    %275 = vmatprep.subr.mxu0 0.0
    %276 = vmatpush1.msra.mxu0 0.0
    %277 = vmatprep.subr.mxu0 0.0
    %278 = vmatpush1.msra.mxu0 0.0
    %279 = vmatprep.subr.mxu0 0.0
    %280 = vmatpush1.msra.mxu0 0.0
    %281 = vmatprep.subr.mxu0 0.0
    %282 = vmatpush1.msra.mxu0 0.0
    %283 = vmatprep.mubr.f32.mxu0 0.0
    %284 = vmatmul.mubr.f32.gmra.mrb[0].mxu0 %v202
    %v285 = vpop.f32.mrb[0].mxu0
    %v286 = vadd.f32 %v198, %v285
    %v287 = vpop.f32.mrb[0].mxu0
    %288 = vmatprep.mubr.f32.mxu0 0.0
    %289 = vmatmul.mubr.f32.gmra.mrb[0].mxu0 %v205
    %v290 = vpop.f32.mrb[0].mxu0
    %v291 = vadd.f32 %v198, %v290
    %v292 = vpop.f32.mrb[0].mxu0
    %293 = vmatprep.mubr.f32.mxu0 0.0
    %294 = vmatmul.mubr.f32.gmra.mrb[0].mxu0 %v208
    %v295 = vpop.f32.mrb[0].mxu0
    %v296 = vadd.f32 %v198, %v295
    %v297 = vpop.f32.mrb[0].mxu0
    %298 = vmatprep.mubr.f32.mxu0 0.0
    %299 = vmatmul.mubr.f32.gmra.mrb[0].mxu0 %v211
    %v300 = vpop.f32.mrb[0].mxu0
    %v301 = vadd.f32 %v198, %v300
    %v302 = vpop.f32.mrb[0].mxu0
    %303 = vmatprep.mubr.f32.mxu0 0.0
    %304 = vmatmul.mubr.f32.gmra.mrb[0].mxu0 %v214
    %v305 = vpop.f32.mrb[0].mxu0
    %v306 = vadd.f32 %v198, %v305
    %v307 = vpop.f32.mrb[0].mxu0
    %308 = vmatprep.mubr.f32.mxu0 0.0
    %309 = vmatmul.mubr.f32.gmra.mrb[0].mxu0 %v217
    %v310 = vpop.f32.mrb[0].mxu0
    %v311 = vadd.f32 %v198, %v310
    %v312 = vpop.f32.mrb[0].mxu0
    %313 = vdwg.mxu0
    %314 = vst [vmem:[#allocation8] sm:$0xff] %v286
    %315 = vst [vmem:[#allocation8 + $0x8] sm:$0xff] %v291
    %316 = vst [vmem:[#allocation8 + $0x10] sm:$0xff] %v296
    %317 = vst [vmem:[#allocation8 + $0x18] sm:$0xff] %v301
    %318 = vst [vmem:[#allocation8 + $0x20] sm:$0xff] %v306
    %319 = vst [vmem:[#allocation8 + $0x28] sm:$0xff] %v311
    // Predicated region
    $region30: #{tpu_custom_call.1} parent=1 // pred_check
      _
    $region31: #{tpu_custom_call.1} parent=1 // pred_check_branch
      %321 = sbr.rel (0) target = $region33
    $region32: #{tpu_custom_call.1} parent=1 // pred_region
      %s323 = ssub.s32 768, 768
      %324 = vsyncadd [#allocation4], %s323
      %s325 = sshll.u32 [#allocation8], 4
      %s326 = int_to_ptr.vmem [resolvable:$true] %s325
      %331 = dma.vmem_to_hbm [thread:$0]  %s326, 768, %s4, [#allocation4], 128, 128, 8
    $region33: #{tpu_custom_call.1} parent=1 // pred_fallthru
      _
    // Predicated region
    $region34: #{tpu_custom_call.1} parent=1 // pred_check
      _
    $region35: #{tpu_custom_call.1} parent=1 // pred_check_branch
      %333 = sbr.rel (0) target = $region37
    $region36: #{tpu_custom_call.1} parent=1 // pred_region
      %334 = dma.done [#allocation4], 768
    $region37: #{tpu_custom_call.1} parent=1 // pred_fallthru
      _
    %335 = vsyncpa [#allocation3], 1
    %336 = vsyncpa [#allocation6], 1
    %337 = vsyncpa [#allocation4], 1

</llo_original>
